<compile_context>
chip_gen: v5e
topology: v5e:2x2
jax: 0.10.0
libtpu: 0.0.40
codegen_flags: <defaults>
</compile_context>

<pallas_src>
import math

import jax
import jax.numpy as jnp
from jax.experimental import pallas as pl
from jax.experimental.pallas import tpu as pltpu


def plrnn_chunk_kernel(z0_ref, s_ref, a_ref, w1t_ref, w2t_ref, ct_ref,
                       h1_ref, h2_ref, out_ref, z_scr):
    c = pl.program_id(0)
    Tc, B, dz = out_ref.shape
    dh = h1_ref.shape[-1]

    @pl.when(c == 0)
    def _():
        # Load the initial latent state into the VMEM carry once.
        z_scr[...] = z0_ref[...].astype(jnp.float32)

    # ---- z-independent work, hoisted OFF the serial chain -------------------
    # One (Tc*B, ds) @ (ds, dz) matmul (+ h2 bias) per chunk; fills MXU
    # sublanes far better than Tc separate 8-row matmuls and removes the
    # s @ C.T + h2 term from every serial step.
    sc = (jnp.dot(s_ref[...].astype(jnp.float32), ct_ref[...],
                  preferred_element_type=jnp.float32)
          + h2_ref[...])                                       # (Tc*B, dz) f32

    # Hoist parameter loads / broadcasts out of the unrolled loop.
    w1t = w1t_ref[...]                                         # (dz, dh)
    w2t = w2t_ref[...]                                         # (dh, dz)
    a_b = jnp.broadcast_to(a_ref[...], (B, dz))
    h1_b = jnp.broadcast_to(h1_ref[...], (B, dh))

    # ---- serial recurrence: fully unrolled, z carried in vregs --------------
    # Static trip count -> full unroll (equivalent to fori_loop(unroll=True)),
    # giving the scheduler one clean dependence chain with no vld/vst per step.
    z = z_scr[...]                                             # (B, dz) f32
    for t in range(Tc):
        za = jnp.maximum(
            jnp.dot(z, w1t, preferred_element_type=jnp.float32) + h1_b, 0.0)
        z = (a_b * z
             + jnp.dot(za, w2t, preferred_element_type=jnp.float32)
             + sc[t * B:(t + 1) * B, :])
        out_ref[t] = z.astype(out_ref.dtype)

    z_scr[...] = z                                             # carry to next chunk


def plrnn_rollout(z0, s_seq, A, W1, W2, h1, h2, C, *, time_chunk=8):
    """Fused T-step PLRNN rollout. s_seq: (T, B, ds); returns (T, B, dz)."""
    T, B, ds = s_seq.shape
    _, dz = z0.shape
    dh = W1.shape[0]

    Tc = max(1, min(time_chunk, T))
    n_chunks = -(-T // Tc)
    T_pad = n_chunks * Tc
    if T_pad != T:
        pad = jnp.zeros((T_pad - T, B, ds), s_seq.dtype)
        s_seq = jnp.concatenate([s_seq, pad], axis=0)

    # Layout plumbing only: flatten (T,B,ds) -> (T*B, ds) so the in-kernel
    # per-chunk s @ C.T is one lane/sublane-friendly 2-D matmul.
    s_flat = s_seq.reshape(T_pad * B, ds)

    args = (z0, s_flat,
            A.reshape(1, dz).astype(jnp.float32),
            W1.T.astype(jnp.float32),                 # (dz, dh) pre-transposed once
            W2.T.astype(jnp.float32),                 # (dh, dz)
            C.T.astype(jnp.float32),                  # (ds, dz)
            h1.reshape(1, dh).astype(jnp.float32),
            h2.reshape(1, dz).astype(jnp.float32))

    resident = lambda c: (0, 0)   # constant index_map -> stays VMEM-resident
    grid_spec = pltpu.PrefetchScalarGridSpec(
        num_scalar_prefetch=0,
        grid=(n_chunks,),
        in_specs=[
            pl.BlockSpec((B, dz), resident),                  # z0
            pl.BlockSpec((Tc * B, ds), lambda c: (c, 0)),     # s chunk (flattened)
            pl.BlockSpec((1, dz), resident),                  # A
            pl.BlockSpec((dz, dh), resident),                 # W1.T
            pl.BlockSpec((dh, dz), resident),                 # W2.T
            pl.BlockSpec((ds, dz), resident),                 # C.T
            pl.BlockSpec((1, dh), resident),                  # h1
            pl.BlockSpec((1, dz), resident),                  # h2
        ],
        out_specs=pl.BlockSpec((Tc, B, dz), lambda c: (c, 0, 0)),
        scratch_shapes=[pltpu.VMEM((B, dz), jnp.float32)],    # latent carry
    )

    out = pl.pallas_call(
        plrnn_chunk_kernel,
        out_shape=jax.ShapeDtypeStruct((T_pad, B, dz), z0.dtype),
        grid_spec=grid_spec,
        compiler_params=pltpu.CompilerParams(
            dimension_semantics=("arbitrary",)),  # sequential recurrence — never "parallel"
    )(*args)
    return out[:T]


def plrnn_step(z, s, A, W1, W2, h1, h2, C):
    """Single PLRNN latent step == PLRNN_Step.forward (W_trial=False)."""
    return plrnn_rollout(z, s[None], A, W1, W2, h1, h2, C, time_chunk=1)[0]


def init_params(key, dz, ds, dim_hidden):
    """Deterministic init matching PLRNN_Step.__init__ (W_trial=False)."""
    k_w1, k_w2, k_c, k_h1, k_h2 = jax.random.split(key, 5)
    r_w1 = 1.0 / math.sqrt(dz)           # init_uniform((dim_hidden, dz))
    r_w2 = 1.0 / math.sqrt(dim_hidden)   # init_uniform((dz, dim_hidden))
    r_c = 1.0 / math.sqrt(ds)            # init_uniform((dz, ds))
    A = jnp.ones((dz,), jnp.float32) * 0.95
    W1 = jax.random.uniform(k_w1, (dim_hidden, dz), jnp.float32, -r_w1, r_w1)
    W2 = jax.random.uniform(k_w2, (dz, dim_hidden), jnp.float32, -r_w2, r_w2)
    C = jax.random.uniform(k_c, (dz, ds), jnp.float32, -r_c, r_c)
    h1 = jax.random.normal(k_h1, (dim_hidden,), jnp.float32)
    h2 = jax.random.normal(k_h2, (dz,), jnp.float32)
    return A, W1, W2, h1, h2, C


def reference_step(z, s, A, W1, W2, h1, h2, C):
    za = jax.nn.relu(z @ W1.T + h1)
    return A * z + za @ W2.T + h2 + s @ C.T


def reference_rollout(z0, s_seq, A, W1, W2, h1, h2, C):
    def step(z, s):
        z_new = reference_step(z, s, A, W1, W2, h1, h2, C)
        return z_new, z_new
    _, zs = jax.lax.scan(step, z0, s_seq)
    return zs


if __name__ == "__main__":
    B, dz, ds, dim_hidden = 8, 32, 16, 64
    T, Tc = 16, 8
    key = jax.random.PRNGKey(0)
    k_param, k_z, k_s = jax.random.split(key, 3)

    A, W1, W2, h1, h2, C = init_params(k_param, dz, ds, dim_hidden)
    z0 = jax.random.normal(k_z, (B, dz), jnp.float32)
    s_seq = jax.random.normal(k_s, (T, B, ds), jnp.float32)

    # 1) single step (exactly PLRNN_Step.forward semantics)
    out_step = jax.block_until_ready(
        plrnn_step(z0, s_seq[0], A, W1, W2, h1, h2, C))
    ref_step = reference_step(z0, s_seq[0], A, W1, W2, h1, h2, C)
    assert out_step.shape == (B, dz)
    assert jnp.allclose(out_step, ref_step, atol=1e-4, rtol=1e-4)

    # 2) fused rollout: T=16 as 2 chunks of Tc=8 (exercises cross-chunk carry)
    out_roll = jax.block_until_ready(
        plrnn_rollout(z0, s_seq, A, W1, W2, h1, h2, C, time_chunk=Tc))
    ref_roll = reference_rollout(z0, s_seq, A, W1, W2, h1, h2, C)
    assert out_roll.shape == (T, B, dz)
    assert jnp.allclose(out_roll, ref_roll, atol=1e-3, rtol=1e-3)

    # 3) non-divisible T (padding path); same block shapes -> reuses the
    #    already-compiled kernel from check 2.
    T2 = 10
    out_pad = jax.block_until_ready(
        plrnn_rollout(z0, s_seq[:T2], A, W1, W2, h1, h2, C, time_chunk=Tc))
    assert out_pad.shape == (T2, B, dz)
    assert jnp.allclose(out_pad, ref_roll[:T2], atol=1e-3, rtol=1e-3)

    print("KERNEL_OK")
</pallas_src>

<mosaic_0001>
module attributes {stable_mosaic.version = 11 : i64} {
  func.func @plrnn_chunk_kernel(%arg0: i32, %arg1: memref<8x32xf32, #tpu.memory_space<vmem>>, %arg2: memref<8x16xf32, #tpu.memory_space<vmem>>, %arg3: memref<1x32xf32, #tpu.memory_space<vmem>>, %arg4: memref<32x64xf32, #tpu.memory_space<vmem>>, %arg5: memref<64x32xf32, #tpu.memory_space<vmem>>, %arg6: memref<16x32xf32, #tpu.memory_space<vmem>>, %arg7: memref<1x64xf32, #tpu.memory_space<vmem>>, %arg8: memref<1x32xf32, #tpu.memory_space<vmem>>, %arg9: memref<1x8x32xf32, #tpu.memory_space<vmem>>, %arg10: memref<8x32xf32, #tpu.memory_space<vmem>>) attributes {dimension_semantics = [#tpu.dimension_semantics<arbitrary>], iteration_bounds = array<i64: 1>, scalar_prefetch = 0 : i64, scratch_operands = 1 : i64, tpu.core_type = #tpu.core_type<tc>, window_params = [{pipeline_mode = #tpu.pipeline_mode<synchronous>, transform_indices = @transform_0, window_bounds = array<i64: 8, 32>}, {transform_indices = @transform_1, window_bounds = array<i64: 8, 16>}, {pipeline_mode = #tpu.pipeline_mode<synchronous>, transform_indices = @transform_2, window_bounds = array<i64: 1, 32>}, {pipeline_mode = #tpu.pipeline_mode<synchronous>, transform_indices = @transform_3, window_bounds = array<i64: 32, 64>}, {pipeline_mode = #tpu.pipeline_mode<synchronous>, transform_indices = @transform_4, window_bounds = array<i64: 64, 32>}, {pipeline_mode = #tpu.pipeline_mode<synchronous>, transform_indices = @transform_5, window_bounds = array<i64: 16, 32>}, {pipeline_mode = #tpu.pipeline_mode<synchronous>, transform_indices = @transform_6, window_bounds = array<i64: 1, 64>}, {pipeline_mode = #tpu.pipeline_mode<synchronous>, transform_indices = @transform_7, window_bounds = array<i64: 1, 32>}, {transform_indices = @transform_8, window_bounds = array<i64: 1, 8, 32>}]} {
    %c0_i32 = arith.constant 0 : i32
    %0 = arith.cmpi eq, %arg0, %c0_i32 : i32
    %1 = arith.extui %0 : i1 to i32
    %c0_i32_0 = arith.constant 0 : i32
    %2 = arith.cmpi ne, %1, %c0_i32_0 : i32
    scf.if %2 {
      %c0_24 = arith.constant 0 : index
      %c0_25 = arith.constant 0 : index
      %30 = vector.load %arg1[%c0_24, %c0_25] : memref<8x32xf32, #tpu.memory_space<vmem>>, vector<8x32xf32>
      %c0_26 = arith.constant 0 : index
      %c0_27 = arith.constant 0 : index
      %31 = vector.load %arg10[%c0_26, %c0_27] : memref<8x32xf32, #tpu.memory_space<vmem>>, vector<8x32xf32>
      tpu.vector_store %arg10[%c0_26, %c0_27], %30 {strides = array<i32>} : memref<8x32xf32, #tpu.memory_space<vmem>>, vector<8x32xf32>,
    } else {
    }
    %c0 = arith.constant 0 : index
    %c0_1 = arith.constant 0 : index
    %3 = vector.load %arg2[%c0, %c0_1] : memref<8x16xf32, #tpu.memory_space<vmem>>, vector<8x16xf32>
    %c0_2 = arith.constant 0 : index
    %c0_3 = arith.constant 0 : index
    %4 = vector.load %arg6[%c0_2, %c0_3] : memref<16x32xf32, #tpu.memory_space<vmem>>, vector<16x32xf32>
    %cst = arith.constant dense<0.000000e+00> : vector<8x32xf32>
    %5 = tpu.matmul %3, %4, %cst {dimension_numbers = #tpu.dot_dimension_numbers<[1], [0], [0], [1], [0, 0, 1, 1], [], []>} : vector<8x16xf32>, vector<16x32xf32>, vector<8x32xf32> -> vector<8x32xf32>
    %c0_4 = arith.constant 0 : index
    %c0_5 = arith.constant 0 : index
    %6 = vector.load %arg8[%c0_4, %c0_5] : memref<1x32xf32, #tpu.memory_space<vmem>>, vector<1x32xf32>
    %7 = vector.broadcast %6 : vector<1x32xf32> to vector<8x32xf32>
    %8 = arith.addf %5, %7 : vector<8x32xf32>
    %c0_6 = arith.constant 0 : index
    %c0_7 = arith.constant 0 : index
    %9 = vector.load %arg4[%c0_6, %c0_7] : memref<32x64xf32, #tpu.memory_space<vmem>>, vector<32x64xf32>
    %c0_8 = arith.constant 0 : index
    %c0_9 = arith.constant 0 : index
    %10 = vector.load %arg5[%c0_8, %c0_9] : memref<64x32xf32, #tpu.memory_space<vmem>>, vector<64x32xf32>
    %c0_10 = arith.constant 0 : index
    %c0_11 = arith.constant 0 : index
    %11 = vector.load %arg3[%c0_10, %c0_11] : memref<1x32xf32, #tpu.memory_space<vmem>>, vector<1x32xf32>
    %12 = vector.shape_cast %11 : vector<1x32xf32> to vector<1x32xf32>
    %13 = vector.broadcast %12 : vector<1x32xf32> to vector<8x32xf32>
    %c0_12 = arith.constant 0 : index
    %c0_13 = arith.constant 0 : index
    %14 = vector.load %arg7[%c0_12, %c0_13] : memref<1x64xf32, #tpu.memory_space<vmem>>, vector<1x64xf32>
    %15 = vector.shape_cast %14 : vector<1x64xf32> to vector<1x64xf32>
    %16 = vector.broadcast %15 : vector<1x64xf32> to vector<8x64xf32>
    %c0_14 = arith.constant 0 : index
    %c0_15 = arith.constant 0 : index
    %17 = vector.load %arg10[%c0_14, %c0_15] : memref<8x32xf32, #tpu.memory_space<vmem>>, vector<8x32xf32>
    %cst_16 = arith.constant dense<0.000000e+00> : vector<8x64xf32>
    %18 = tpu.matmul %17, %9, %cst_16 {dimension_numbers = #tpu.dot_dimension_numbers<[1], [0], [0], [1], [0, 0, 1, 1], [], []>} : vector<8x32xf32>, vector<32x64xf32>, vector<8x64xf32> -> vector<8x64xf32>
    %19 = arith.addf %18, %16 : vector<8x64xf32>
    %cst_17 = arith.constant 0.000000e+00 : f32
    %20 = vector.broadcast %cst_17 : f32 to vector<8x64xf32>
    %21 = arith.maximumf %19, %20 : vector<8x64xf32>
    %22 = arith.mulf %13, %17 : vector<8x32xf32>
    %cst_18 = arith.constant dense<0.000000e+00> : vector<8x32xf32>
    %23 = tpu.matmul %21, %10, %cst_18 {dimension_numbers = #tpu.dot_dimension_numbers<[1], [0], [0], [1], [0, 0, 1, 1], [], []>} : vector<8x64xf32>, vector<64x32xf32>, vector<8x32xf32> -> vector<8x32xf32>
    %24 = arith.addf %22, %23 : vector<8x32xf32>
    %25 = arith.addf %24, %8 : vector<8x32xf32>
    %c0_19 = arith.constant 0 : index
    %c0_20 = arith.constant 0 : index
    %c0_21 = arith.constant 0 : index
    %26 = vector.load %arg9[%c0_19, %c0_20, %c0_21] : memref<1x8x32xf32, #tpu.memory_space<vmem>>, vector<1x8x32xf32>
    %27 = vector.shape_cast %26 : vector<1x8x32xf32> to vector<8x32xf32>
    %28 = vector.shape_cast %25 : vector<8x32xf32> to vector<1x8x32xf32>
    tpu.vector_store %arg9[%c0_19, %c0_20, %c0_21], %28 {strides = array<i32>} : memref<1x8x32xf32, #tpu.memory_space<vmem>>, vector<1x8x32xf32>,
    %c0_22 = arith.constant 0 : index
    %c0_23 = arith.constant 0 : index
    %29 = vector.load %arg10[%c0_22, %c0_23] : memref<8x32xf32, #tpu.memory_space<vmem>>, vector<8x32xf32>
    tpu.vector_store %arg10[%c0_22, %c0_23], %25 {strides = array<i32>} : memref<8x32xf32, #tpu.memory_space<vmem>>, vector<8x32xf32>,
    return
  }
  func.func @transform_0(%arg0: i32) -> (i32, i32) {
    %c0_i32 = arith.constant 0 : i32
    %c0_i32_0 = arith.constant 0 : i32
    %c0_i32_1 = arith.constant 0 : i32
    return %c0_i32, %c0_i32_0 : i32, i32
  }
  func.func @transform_1(%arg0: i32) -> (i32, i32) {
    %c0_i32 = arith.constant 0 : i32
    %c0_i32_0 = arith.constant 0 : i32
    return %arg0, %c0_i32 : i32, i32
  }
  func.func @transform_2(%arg0: i32) -> (i32, i32) {
    %c0_i32 = arith.constant 0 : i32
    %c0_i32_0 = arith.constant 0 : i32
    %c0_i32_1 = arith.constant 0 : i32
    return %c0_i32, %c0_i32_0 : i32, i32
  }
  func.func @transform_3(%arg0: i32) -> (i32, i32) {
    %c0_i32 = arith.constant 0 : i32
    %c0_i32_0 = arith.constant 0 : i32
    %c0_i32_1 = arith.constant 0 : i32
    return %c0_i32, %c0_i32_0 : i32, i32
  }
  func.func @transform_4(%arg0: i32) -> (i32, i32) {
    %c0_i32 = arith.constant 0 : i32
    %c0_i32_0 = arith.constant 0 : i32
    %c0_i32_1 = arith.constant 0 : i32
    return %c0_i32, %c0_i32_0 : i32, i32
  }
  func.func @transform_5(%arg0: i32) -> (i32, i32) {
    %c0_i32 = arith.constant 0 : i32
    %c0_i32_0 = arith.constant 0 : i32
    %c0_i32_1 = arith.constant 0 : i32
    return %c0_i32, %c0_i32_0 : i32, i32
  }
  func.func @transform_6(%arg0: i32) -> (i32, i32) {
    %c0_i32 = arith.constant 0 : i32
    %c0_i32_0 = arith.constant 0 : i32
    %c0_i32_1 = arith.constant 0 : i32
    return %c0_i32, %c0_i32_0 : i32, i32
  }
  func.func @transform_7(%arg0: i32) -> (i32, i32) {
    %c0_i32 = arith.constant 0 : i32
    %c0_i32_0 = arith.constant 0 : i32
    %c0_i32_1 = arith.constant 0 : i32
    return %c0_i32, %c0_i32_0 : i32, i32
  }
  func.func @transform_8(%arg0: i32) -> (i32, i32, i32) {
    %c0_i32 = arith.constant 0 : i32
    %c0_i32_0 = arith.constant 0 : i32
    %c0_i32_1 = arith.constant 0 : i32
    return %arg0, %c0_i32, %c0_i32_0 : i32, i32, i32
  }
}

</mosaic_0001>

<llo_original>
// kernel: tpu_custom_call.1
$region0: #{tpu_custom_call.1}
  #allocation0 [shape = 'u32[]', space=smem, size = 0x4, offset = 0x4, fixed_abs, tag = 'smem constant byte address 0x4 - core index']
  #allocation1 [shape = 'u32[72,128]{1,0:T(1,128)}', space=vmem, size = 0x9000, scoped, tag = 'internal scratch']
  #allocation2 [shape = 'f32[8,32]{1,0:T(8,128)}', space=vmem, size = 0x1000, scoped, tag = 'scratch operand']
  %s0 = inlined_call_operand.vmem [shape: f32[8,32], index: 0, kind: input, shape index: {}]
  %s1 = inlined_call_operand.vmem [shape: f32[8,16], index: 1, kind: input, shape index: {}]
  %s2 = inlined_call_operand.vmem [shape: f32[1,32], index: 2, kind: input, shape index: {}]
  %s3 = inlined_call_operand.vmem [shape: f32[32,64], index: 3, kind: input, shape index: {}]
  %s4 = inlined_call_operand.vmem [shape: f32[64,32], index: 4, kind: input, shape index: {}]
  %s5 = inlined_call_operand.vmem [shape: f32[16,32], index: 5, kind: input, shape index: {}]
  %s6 = inlined_call_operand.vmem [shape: f32[1,64], index: 6, kind: input, shape index: {}]
  %s7 = inlined_call_operand.vmem [shape: f32[1,32], index: 7, kind: input, shape index: {}]
  %s8 = inlined_call_operand.hbm [shape: f32[1,8,32], index: 8, kind: output, shape index: {}]
  %s9 = sld [smem:[#allocation0]]
  $region46: #{tpu_custom_call.1} parent=0
    _
  %s11 = ssub.s32 1, %s9
  %s12 = scalar_select 0, %s11, %s9
  $region1: #{tpu_custom_call.1} parent=0
    #allocation3 [shape = 'u8[4096]{0}', space=vmem, size = 0x1000, scoped, tag = 'output window, operand 0, single buffered']
    #allocation4 [shape = 's32[1]{0}', space=sflag, size = 0x4, scoped, tag = 'scoped memory for tpu_custom_call.1']
    %13 = vsyncpa [#allocation4], 0
    // Predicated region
    $region2: #{tpu_custom_call.1} parent=1 // pred_check
      _
    $region3: #{tpu_custom_call.1} parent=1 // pred_check_branch
      %15 = sbr.rel (0) target = $region5
    $region4: #{tpu_custom_call.1} parent=1 // pred_region
      _
    $region5: #{tpu_custom_call.1} parent=1 // pred_fallthru
      _
    // Predicated region
    $region6: #{tpu_custom_call.1} parent=1 // pred_check
      _
    $region7: #{tpu_custom_call.1} parent=1 // pred_check_branch
      %17 = sbr.rel (0) target = $region9
    $region8: #{tpu_custom_call.1} parent=1 // pred_region
      _
    $region9: #{tpu_custom_call.1} parent=1 // pred_fallthru
      _
    // Predicated region
    $region10: #{tpu_custom_call.1} parent=1 // pred_check
      _
    $region11: #{tpu_custom_call.1} parent=1 // pred_check_branch
      %19 = sbr.rel (0) target = $region13
    $region12: #{tpu_custom_call.1} parent=1 // pred_region
      _
    $region13: #{tpu_custom_call.1} parent=1 // pred_fallthru
      _
    // Predicated region
    $region14: #{tpu_custom_call.1} parent=1 // pred_check
      _
    $region15: #{tpu_custom_call.1} parent=1 // pred_check_branch
      %21 = sbr.rel (0) target = $region17
    $region16: #{tpu_custom_call.1} parent=1 // pred_region
      _
    $region17: #{tpu_custom_call.1} parent=1 // pred_fallthru
      _
    // Predicated region
    $region18: #{tpu_custom_call.1} parent=1 // pred_check
      _
    $region19: #{tpu_custom_call.1} parent=1 // pred_check_branch
      %23 = sbr.rel (0) target = $region21
    $region20: #{tpu_custom_call.1} parent=1 // pred_region
      _
    $region21: #{tpu_custom_call.1} parent=1 // pred_fallthru
      _
    // Predicated region
    $region22: #{tpu_custom_call.1} parent=1 // pred_check
      _
    $region23: #{tpu_custom_call.1} parent=1 // pred_check_branch
      %25 = sbr.rel (0) target = $region25
    $region24: #{tpu_custom_call.1} parent=1 // pred_region
      _
    $region25: #{tpu_custom_call.1} parent=1 // pred_fallthru
      _
    // Predicated region
    $region26: #{tpu_custom_call.1} parent=1 // pred_check
      _
    $region27: #{tpu_custom_call.1} parent=1 // pred_check_branch
      %27 = sbr.rel (0) target = $region29
    $region28: #{tpu_custom_call.1} parent=1 // pred_region
      _
    $region29: #{tpu_custom_call.1} parent=1 // pred_fallthru
      _
    // Predicated region
    $region30: #{tpu_custom_call.1} parent=1 // pred_check
      _
    $region31: #{tpu_custom_call.1} parent=1 // pred_check_branch
      %29 = sbr.rel (0) target = $region33
    $region32: #{tpu_custom_call.1} parent=1 // pred_region
      _
    $region33: #{tpu_custom_call.1} parent=1 // pred_fallthru
      _
    %p30 = scmp.eq.s32.totalorder 0, 0
    // Predicated region
    $region34: #{tpu_custom_call.1} parent=1 // pred_check
      %p31 = pneg %p30
    $region35: #{tpu_custom_call.1} parent=1 // pred_check_branch
      %33 = sbr.rel (%p31) target = $region37
    $region36: #{tpu_custom_call.1} parent=1 // pred_region
      %v34 = vld [vmem:[%s0] sm:$0xff]
      %vm35 = vcmask 261120
      %36 = vst.msk [vmem:[#allocation2] sm:$0xff] %vm35, %v34
    $region37: #{tpu_custom_call.1} parent=1 // pred_fallthru
      _
    %v37 = vld [vmem:[%s1] sm:$0xff]
    %v38 = vld [vmem:[%s5] sm:$0xff]
    %v39 = vld [vmem:[%s5 + $0x8] sm:$0xff]
    %v40 = vld [vmem:[%s7] sm:$0x1]
    %v42 = vperm.slane %v40, 0
    %vm44 = vcmask 130048
    %v46 = vsel %vm44, %v37, 0
    %48 = vmatpush.msra.mxu0 0.0
    %49 = vmatpush.msra.mxu0 0.0
    %50 = vmatpush.msra.mxu0 0.0
    %51 = vmatpush.msra.mxu0 0.0
    %52 = vmatpush.msra.mxu0 0.0
    %53 = vmatpush.msra.mxu0 0.0
    %54 = vmatpush.msra.mxu0 0.0
    %55 = vmatpush.msra.mxu0 0.0
    %56 = vmatpush.msra.mxu0 0.0
    %57 = vmatpush.msra.mxu0 0.0
    %58 = vmatpush.msra.mxu0 0.0
    %59 = vmatpush.msra.mxu0 0.0
    %60 = vmatpush.msra.mxu0 0.0
    %61 = vmatpush.msra.mxu0 0.0
    %62 = vmatpush.msra.mxu0 %v39
    %63 = vmatpush.msra.mxu0 %v38
    %64 = vmatmul.f32.gmra.mxu0 %v46
    %v65 = vpop.f32.mrf.mxu0
    %v66 = vadd.f32 %v42, %v65
    %67 = vdwg.mxu0
    %v68 = vld [vmem:[%s3] sm:$0xff]
    %v69 = vld [vmem:[%s3 + $0x8] sm:$0xff]
    %v70 = vld [vmem:[%s3 + $0x10] sm:$0xff]
    %v71 = vld [vmem:[%s3 + $0x18] sm:$0xff]
    %v72 = vld [vmem:[%s4] sm:$0xff]
    %v73 = vld [vmem:[%s4 + $0x8] sm:$0xff]
    %v74 = vld [vmem:[%s4 + $0x10] sm:$0xff]
    %v75 = vld [vmem:[%s4 + $0x18] sm:$0xff]
    %v76 = vld [vmem:[%s4 + $0x20] sm:$0xff]
    %v77 = vld [vmem:[%s4 + $0x28] sm:$0xff]
    %v78 = vld [vmem:[%s4 + $0x30] sm:$0xff]
    %v79 = vld [vmem:[%s4 + $0x38] sm:$0xff]
    %v80 = vld [vmem:[%s2] sm:$0x1]
    %v82 = vperm.slane %v80, 0
    %v84 = vld [vmem:[%s6] sm:$0x1]
    %v86 = vperm.slane %v84, 0
    %v88 = vld [vmem:[#allocation2] sm:$0xff]
    %vm89 = vcmask 261120
    %v91 = vsel %vm89, %v88, 0
    %93 = vmatpush.msra.mxu0 0.0
    %94 = vmatpush.msra.mxu0 0.0
    %95 = vmatpush.msra.mxu0 0.0
    %96 = vmatpush.msra.mxu0 0.0
    %97 = vmatpush.msra.mxu0 0.0
    %98 = vmatpush.msra.mxu0 0.0
    %99 = vmatpush.msra.mxu0 0.0
    %100 = vmatpush.msra.mxu0 0.0
    %101 = vmatpush.msra.mxu0 0.0
    %102 = vmatpush.msra.mxu0 0.0
    %103 = vmatpush.msra.mxu0 0.0
    %104 = vmatpush.msra.mxu0 0.0
    %105 = vmatpush.msra.mxu0 %v71
    %106 = vmatpush.msra.mxu0 %v70
    %107 = vmatpush.msra.mxu0 %v69
    %108 = vmatpush.msra.mxu0 %v68
    %109 = vmatmul.f32.gmra.mxu0 %v91
    %v110 = vpop.f32.mrf.mxu0
    %v111 = vadd.f32 %v86, %v110
    %112 = vdwg.mxu0
    %v113 = vmax.f32 %v111, 0.0
    %v114 = vmul.f32 %v82, %v88
    %vm115 = vcmask 523264
    %v117 = vsel %vm115, %v113, 0
    %119 = vmatpush.msra.mxu0 0.0
    %120 = vmatpush.msra.mxu0 0.0
    %121 = vmatpush.msra.mxu0 0.0
    %122 = vmatpush.msra.mxu0 0.0
    %123 = vmatpush.msra.mxu0 0.0
    %124 = vmatpush.msra.mxu0 0.0
    %125 = vmatpush.msra.mxu0 0.0
    %126 = vmatpush.msra.mxu0 0.0
    %127 = vmatpush.msra.mxu0 %v79
    %128 = vmatpush.msra.mxu0 %v78
    %129 = vmatpush.msra.mxu0 %v77
    %130 = vmatpush.msra.mxu0 %v76
    %131 = vmatpush.msra.mxu0 %v75
    %132 = vmatpush.msra.mxu0 %v74
    %133 = vmatpush.msra.mxu0 %v73
    %134 = vmatpush.msra.mxu0 %v72
    %135 = vmatmul.f32.gmra.mxu0 %v117
    %v136 = vpop.f32.mrf.mxu0
    %v137 = vadd.f32 0.0, %v136
    %138 = vdwg.mxu0
    %v139 = vadd.f32 %v114, %v137
    %v140 = vadd.f32 %v139, %v66
    %141 = vst.msk [vmem:[#allocation3] sm:$0xff] %vm89, %v140
    %142 = vst.msk [vmem:[#allocation2] sm:$0xff] %vm89, %v140
    // Predicated region
    $region38: #{tpu_custom_call.1} parent=1 // pred_check
      _
    $region39: #{tpu_custom_call.1} parent=1 // pred_check_branch
      %144 = sbr.rel (0) target = $region41
    $region40: #{tpu_custom_call.1} parent=1 // pred_region
      %146 = vsyncadd [#allocation4], 0
      %s148 = sshll.u32 [#allocation3], 4
      %s149 = int_to_ptr.vmem [resolvable:$true] %s148
      %s150 = sshll.u32 %s8, 4
      %s151 = int_to_ptr.hbm [resolvable:$true] %s150
      %153 = dma.vmem_to_hbm [thread:$0]  %s149, 128, %s151, [#allocation4]
    $region41: #{tpu_custom_call.1} parent=1 // pred_fallthru
      _
    // Predicated region
    $region42: #{tpu_custom_call.1} parent=1 // pred_check
      _
    $region43: #{tpu_custom_call.1} parent=1 // pred_check_branch
      %155 = sbr.rel (0) target = $region45
    $region44: #{tpu_custom_call.1} parent=1 // pred_region
      %157 = dma.done [#allocation4], 128
    $region45: #{tpu_custom_call.1} parent=1 // pred_fallthru
      _
    %158 = vsyncpa [#allocation4], 1

</llo_original>
